<compile_context>
chip_gen: v7x
topology: tpu7x:2x2x1
jax: 0.10.0
libtpu: 0.0.40
codegen_flags: <defaults>
</compile_context>

<pallas_src>
import functools
import math

import jax
import jax.numpy as jnp
from jax import lax
from jax.experimental import pallas as pl
from jax.experimental.pallas import tpu as pltpu

# TRAIN_CONFIG['temperature'] is not defined in the snippet; use the common
# SimCLR default deterministically.
TEMPERATURE = 0.5


def _ntxent_lse_kernel(q_ref, k_ref, lse_ref, m_sc, s_sc, *,
                       inv_temp, pos_correction):
    ki = pl.program_id(1)
    nk = pl.num_programs(1)

    @pl.when(ki == 0)
    def _init():
        m_sc[...] = jnp.full_like(m_sc, -jnp.inf)
        s_sc[...] = jnp.zeros_like(s_sc)

    # [tq, tk] cosine-similarity block: bf16 pre-normalized rows on the MXU
    # (A @ B^T with no explicit transpose), f32 accumulation, then one VPU
    # scale by 1/T.
    sim = lax.dot_general(q_ref[...], k_ref[...], (((1,), (1,)), ((), ())),
                          preferred_element_type=jnp.float32) * inv_temp

    # Online (streaming) logsumexp over the UNMASKED similarities.
    m_prev = m_sc[...]
    m_new = jnp.maximum(m_prev, jnp.max(sim, axis=1, keepdims=True))
    s_sc[...] = (jnp.exp(m_prev - m_new) * s_sc[...]
                 + jnp.sum(jnp.exp(sim - m_new), axis=1, keepdims=True))
    m_sc[...] = m_new

    @pl.when(ki == nk - 1)
    def _finalize():
        # Closed-form mask / appended-positive correction:
        # the masked diagonal + masked partner slot contribute exp(0)+exp(0)=2,
        # the appended positive logit equals the partner similarity already in
        # the unmasked sum, and the true diagonal (= 1/T) must be removed:
        #   denom = sum_j exp(sim_ij - m) + (2 - e^{1/T}) * exp(-m)
        m = m_sc[...]
        denom = s_sc[...] + pos_correction * jnp.exp(-m)
        lse_ref[...] = m + jnp.log(jnp.maximum(denom, 1e-30))


def _pick_tile(size, cap):
    """Largest multiple of 8 that divides `size` and is <= cap."""
    t = min(cap, size)
    t -= t % 8
    while t >= 8 and size % t:
        t -= 8
    return t


def _detect_vmem_bytes():
    """Physical per-core VMEM, with conservative fallbacks."""
    try:
        info = pltpu.get_tpu_info()
        for name in ("vmem_capacity_bytes", "vmem_size_bytes", "vmem_bytes"):
            v = getattr(info, name, None)
            if v:
                return int(v)
    except Exception:
        pass
    try:
        kind = jax.devices()[0].device_kind.lower()
        if "v7" in kind:
            return 64 * 1024 * 1024
    except Exception:
        pass
    return 128 * 1024 * 1024


def _select_tiles(B, n, dp, budget_bytes, tq_cap, tk_cap):
    tq = _pick_tile(B, min(tq_cap, B))   # tq <= B keeps nq >= 2 (v7x megacore)
    tk = _pick_tile(n, min(tk_cap, n))   # tk == 2B when it fits -> key resident
    if tq < 8 or tk < 8:
        # TODO(synk): pad/mask odd batch sizes instead of rejecting them.
        raise ValueError("batch size must be a multiple of 8")

    def vmem_est(tq_, tk_):
        # double-buffered bf16 input windows + f32 sim/exp temporaries (x3 margin)
        blocks = 2 * (tq_ * dp * 2) + 2 * (tk_ * dp * 2) + 2 * (tq_ * 4)
        interm = 3 * tq_ * tk_ * 4
        return blocks + interm

    while vmem_est(tq, tk) > budget_bytes and tk > 8:
        tk = _pick_tile(n, max(8, tk // 2))
    while vmem_est(tq, tk) > budget_bytes and tq > 8:
        tq = _pick_tile(B, max(8, tq // 2))
    return tq, tk


def ntxent_loss(z_i, z_j, temperature=TEMPERATURE, *, tq_cap=512, tk_cap=2048):
    B, D = z_i.shape
    if z_j.shape != (B, D):
        raise ValueError("z_i and z_j must have identical [batch, dim] shapes")
    n = 2 * B

    # Generation-aware VMEM budget: 48 MiB scoped limit on 64-MiB parts (v7x),
    # 96 MiB on 128-MiB parts (v5e/v6e).
    phys_vmem = _detect_vmem_bytes()
    vmem_limit = 48 * 1024 * 1024 if phys_vmem <= 64 * 1024 * 1024 else 96 * 1024 * 1024

    # Pre-normalize in f32 (matches F.normalize: x / max(||x||, 1e-12)), pad the
    # feature axis to a 128-lane multiple (zeros change neither norms nor dots),
    # and hand the kernel bf16 rows — all normalization is hoisted off the hot loop.
    rep = jnp.concatenate([z_i, z_j], axis=0).astype(jnp.float32)
    rep = rep * lax.rsqrt(jnp.maximum(jnp.sum(rep * rep, axis=1, keepdims=True), 1e-24))
    dp = ((D + 127) // 128) * 128
    if dp != D:
        rep = jnp.pad(rep, ((0, 0), (0, dp - D)))
    rep = rep.astype(jnp.bfloat16)

    tq, tk = _select_tiles(B, n, dp, int(0.5 * vmem_limit), tq_cap, tk_cap)
    nq = n // tq
    nk = n // tk

    inv_temp = 1.0 / float(temperature)
    pos_correction = 2.0 - math.exp(inv_temp)

    kernel = functools.partial(_ntxent_lse_kernel,
                               inv_temp=inv_temp,
                               pos_correction=pos_correction)

    grid_spec = pltpu.PrefetchScalarGridSpec(
        num_scalar_prefetch=0,
        grid=(nq, nk),
        in_specs=[
            pl.BlockSpec((tq, dp), lambda qi, ki: (qi, 0)),   # query rows (bf16, normalized)
            pl.BlockSpec((tk, dp), lambda qi, ki: (ki, 0)),   # key rows   (bf16, normalized)
        ],
        out_specs=pl.BlockSpec((tq, 1), lambda qi, ki: (qi, 0)),
        scratch_shapes=[
            pltpu.VMEM((tq, 1), jnp.float32),   # running max
            pltpu.VMEM((tq, 1), jnp.float32),   # running sum
        ],
    )

    lse = pl.pallas_call(
        kernel,
        out_shape=jax.ShapeDtypeStruct((n, 1), jnp.float32),
        grid_spec=grid_spec,
        compiler_params=pltpu.CompilerParams(
            dimension_semantics=("parallel", "arbitrary"),
            vmem_limit_bytes=vmem_limit,
        ),
        cost_estimate=pl.CostEstimate(
            flops=2 * n * n * dp + n * n,
            transcendentals=n * n + 3 * n,
            bytes_accessed=2 * dp * (n + nq * n) + 4 * n,
        ),
    )(rep, rep)

    # CrossEntropyLoss(reduction='sum') / (2 * B); every row contributes its lse.
    return jnp.sum(lse) / n


def _ntxent_reference(z_i, z_j, temperature=TEMPERATURE):
    """Pure-JAX (f32) re-implementation of the torch forward (negatives=None)."""
    Bn = z_i.shape[0]

    def norm(x):
        return x / jnp.maximum(jnp.linalg.norm(x, axis=1, keepdims=True), 1e-12)

    rep = jnp.concatenate([norm(z_i), norm(z_j)], axis=0)
    n = rep.shape[0]
    sim = rep @ rep.T / temperature
    row = jnp.arange(n)[:, None]
    col = jnp.arange(n)[None, :]
    drop = (row == col) | (jnp.abs(row - col) == Bn)
    masked = jnp.where(drop, 0.0, sim)
    pos = sim[jnp.arange(n), (jnp.arange(n) + Bn) % n][:, None]
    logits = jnp.concatenate([masked, pos], axis=1)
    labels = jnp.concatenate([jnp.arange(Bn, 2 * Bn), jnp.arange(Bn)])
    lse = jax.scipy.special.logsumexp(logits, axis=1)
    return jnp.sum(lse - logits[jnp.arange(n), labels]) / n


if __name__ == "__main__":
    key = jax.random.PRNGKey(0)
    k1, k2 = jax.random.split(key)
    B, D = 8, 32
    z_i = jax.random.normal(k1, (B, D), dtype=jnp.float32)
    z_j = jax.random.normal(k2, (B, D), dtype=jnp.float32)

    ref = _ntxent_reference(z_i, z_j)

    # Default tiles: key slab resident (grid = (2, 1)).  Tolerance loosened for
    # bf16 MXU inputs.
    loss = jax.block_until_ready(ntxent_loss(z_i, z_j))
    assert jnp.allclose(loss, ref, rtol=2e-2, atol=2e-2), (loss, ref)

    # Force small tiles (grid = (2, 2)) to exercise the online-logsumexp
    # accumulation and the closed-form finalize across multiple key tiles.
    loss_tiled = jax.block_until_ready(ntxent_loss(z_i, z_j, tq_cap=8, tk_cap=8))
    assert jnp.allclose(loss_tiled, ref, rtol=2e-2, atol=2e-2), (loss_tiled, ref)

    print("KERNEL_OK")
</pallas_src>

<mosaic_0001>
module attributes {stable_mosaic.version = 11 : i64} {
  func.func @_ntxent_lse_kernel(%arg0: i32, %arg1: i32, %arg2: memref<8x128xbf16, #tpu.memory_space<vmem>>, %arg3: memref<16x128xbf16, #tpu.memory_space<vmem>>, %arg4: memref<8x1xf32, #tpu.memory_space<vmem>>, %arg5: memref<8x1xf32, #tpu.memory_space<vmem>>, %arg6: memref<8x1xf32, #tpu.memory_space<vmem>>) attributes {dimension_semantics = [#tpu.dimension_semantics<parallel>, #tpu.dimension_semantics<arbitrary>], iteration_bounds = array<i64: 2, 1>, scalar_prefetch = 0 : i64, scratch_operands = 2 : i64, tpu.core_type = #tpu.core_type<tc>, window_params = [{transform_indices = @transform_0, window_bounds = array<i64: 8, 128>}, {transform_indices = @transform_1, window_bounds = array<i64: 16, 128>}, {transform_indices = @transform_2, window_bounds = array<i64: 8, 1>}]} {
    %c0_i32 = arith.constant 0 : i32
    %0 = arith.cmpi eq, %arg1, %c0_i32 : i32
    %1 = arith.extui %0 : i1 to i32
    %c0_i32_0 = arith.constant 0 : i32
    %2 = arith.cmpi ne, %1, %c0_i32_0 : i32
    scf.if %2 {
      %cst_17 = arith.constant 0xFF800000 : f32
      %27 = vector.broadcast %cst_17 : f32 to vector<8x1xf32>
      %c0_18 = arith.constant 0 : index
      %c0_19 = arith.constant 0 : index
      %28 = vector.load %arg5[%c0_18, %c0_19] : memref<8x1xf32, #tpu.memory_space<vmem>>, vector<8x1xf32>
      tpu.vector_store %arg5[%c0_18, %c0_19], %27 {strides = array<i32>} : memref<8x1xf32, #tpu.memory_space<vmem>>, vector<8x1xf32>,
      %cst_20 = arith.constant 0.000000e+00 : f32
      %29 = vector.broadcast %cst_20 : f32 to vector<8x1xf32>
      %c0_21 = arith.constant 0 : index
      %c0_22 = arith.constant 0 : index
      %30 = vector.load %arg6[%c0_21, %c0_22] : memref<8x1xf32, #tpu.memory_space<vmem>>, vector<8x1xf32>
      tpu.vector_store %arg6[%c0_21, %c0_22], %29 {strides = array<i32>} : memref<8x1xf32, #tpu.memory_space<vmem>>, vector<8x1xf32>,
    } else {
    }
    %c0 = arith.constant 0 : index
    %c0_1 = arith.constant 0 : index
    %3 = vector.load %arg2[%c0, %c0_1] : memref<8x128xbf16, #tpu.memory_space<vmem>>, vector<8x128xbf16>
    %c0_2 = arith.constant 0 : index
    %c0_3 = arith.constant 0 : index
    %4 = vector.load %arg3[%c0_2, %c0_3] : memref<16x128xbf16, #tpu.memory_space<vmem>>, vector<16x128xbf16>
    %cst = arith.constant dense<0.000000e+00> : vector<8x16xf32>
    %5 = tpu.matmul %3, %4, %cst {dimension_numbers = #tpu.dot_dimension_numbers<[1], [1], [0], [0], [0, 0, 1, 0], [], []>} : vector<8x128xbf16>, vector<16x128xbf16>, vector<8x16xf32> -> vector<8x16xf32>
    %cst_4 = arith.constant 2.000000e+00 : f32
    %6 = vector.broadcast %cst_4 : f32 to vector<8x16xf32>
    %7 = arith.mulf %5, %6 : vector<8x16xf32>
    %c0_5 = arith.constant 0 : index
    %c0_6 = arith.constant 0 : index
    %8 = vector.load %arg5[%c0_5, %c0_6] : memref<8x1xf32, #tpu.memory_space<vmem>>, vector<8x1xf32>
    %cst_7 = arith.constant dense<0xFF800000> : vector<8xf32>
    %9 = vector.multi_reduction <maximumf>, %7, %cst_7 [1] : vector<8x16xf32> to vector<8xf32>
    %10 = vector.shape_cast %9 : vector<8xf32> to vector<8x1xf32>
    %11 = arith.maximumf %8, %10 : vector<8x1xf32>
    %12 = arith.subf %8, %11 : vector<8x1xf32>
    %13 = math.exp %12 : vector<8x1xf32>
    %c0_8 = arith.constant 0 : index
    %c0_9 = arith.constant 0 : index
    %14 = vector.load %arg6[%c0_8, %c0_9] : memref<8x1xf32, #tpu.memory_space<vmem>>, vector<8x1xf32>
    %15 = arith.mulf %13, %14 : vector<8x1xf32>
    %16 = vector.broadcast %11 : vector<8x1xf32> to vector<8x16xf32>
    %17 = arith.subf %7, %16 : vector<8x16xf32>
    %18 = math.exp %17 : vector<8x16xf32>
    %cst_10 = arith.constant dense<0.000000e+00> : vector<8xf32>
    %19 = vector.multi_reduction <add>, %18, %cst_10 [1] : vector<8x16xf32> to vector<8xf32>
    %20 = vector.shape_cast %19 : vector<8xf32> to vector<8x1xf32>
    %21 = arith.addf %15, %20 : vector<8x1xf32>
    %c0_11 = arith.constant 0 : index
    %c0_12 = arith.constant 0 : index
    %22 = vector.load %arg6[%c0_11, %c0_12] : memref<8x1xf32, #tpu.memory_space<vmem>>, vector<8x1xf32>
    tpu.vector_store %arg6[%c0_11, %c0_12], %21 {strides = array<i32>} : memref<8x1xf32, #tpu.memory_space<vmem>>, vector<8x1xf32>,
    %c0_13 = arith.constant 0 : index
    %c0_14 = arith.constant 0 : index
    %23 = vector.load %arg5[%c0_13, %c0_14] : memref<8x1xf32, #tpu.memory_space<vmem>>, vector<8x1xf32>
    tpu.vector_store %arg5[%c0_13, %c0_14], %11 {strides = array<i32>} : memref<8x1xf32, #tpu.memory_space<vmem>>, vector<8x1xf32>,
    %c0_i32_15 = arith.constant 0 : i32
    %24 = arith.cmpi eq, %arg1, %c0_i32_15 : i32
    %25 = arith.extui %24 : i1 to i32
    %c0_i32_16 = arith.constant 0 : i32
    %26 = arith.cmpi ne, %25, %c0_i32_16 : i32
    scf.if %26 {
      %c0_17 = arith.constant 0 : index
      %c0_18 = arith.constant 0 : index
      %27 = vector.load %arg5[%c0_17, %c0_18] : memref<8x1xf32, #tpu.memory_space<vmem>>, vector<8x1xf32>
      %c0_19 = arith.constant 0 : index
      %c0_20 = arith.constant 0 : index
      %28 = vector.load %arg6[%c0_19, %c0_20] : memref<8x1xf32, #tpu.memory_space<vmem>>, vector<8x1xf32>
      %cst_21 = arith.constant 0.000000e+00 : f32
      %29 = vector.broadcast %cst_21 : f32 to vector<8x1xf32>
      %30 = arith.subf %29, %27 : vector<8x1xf32>
      %31 = math.exp %30 : vector<8x1xf32>
      %cst_22 = arith.constant -5.38905621 : f32
      %32 = vector.broadcast %cst_22 : f32 to vector<8x1xf32>
      %33 = arith.mulf %32, %31 : vector<8x1xf32>
      %34 = arith.addf %28, %33 : vector<8x1xf32>
      %cst_23 = arith.constant 1.000000e-30 : f32
      %35 = vector.broadcast %cst_23 : f32 to vector<8x1xf32>
      %36 = arith.maximumf %34, %35 : vector<8x1xf32>
      %37 = math.log %36 : vector<8x1xf32>
      %38 = arith.addf %27, %37 : vector<8x1xf32>
      %c0_24 = arith.constant 0 : index
      %c0_25 = arith.constant 0 : index
      %39 = vector.load %arg4[%c0_24, %c0_25] : memref<8x1xf32, #tpu.memory_space<vmem>>, vector<8x1xf32>
      tpu.vector_store %arg4[%c0_24, %c0_25], %38 {strides = array<i32>} : memref<8x1xf32, #tpu.memory_space<vmem>>, vector<8x1xf32>,
    } else {
    }
    return
  }
  func.func @transform_0(%arg0: i32, %arg1: i32) -> (i32, i32) {
    %c0_i32 = arith.constant 0 : i32
    %c0_i32_0 = arith.constant 0 : i32
    return %arg0, %c0_i32 : i32, i32
  }
  func.func @transform_1(%arg0: i32, %arg1: i32) -> (i32, i32) {
    %c0_i32 = arith.constant 0 : i32
    %c0_i32_0 = arith.constant 0 : i32
    return %arg1, %c0_i32 : i32, i32
  }
  func.func @transform_2(%arg0: i32, %arg1: i32) -> (i32, i32) {
    %c0_i32 = arith.constant 0 : i32
    %c0_i32_0 = arith.constant 0 : i32
    return %arg0, %c0_i32 : i32, i32
  }
}

</mosaic_0001>

<llo_original>
// kernel: tpu_custom_call.1
$region0: #{tpu_custom_call.1}
  #allocation0 [shape = 'u32[]', space=smem, size = 0x4, offset = 0x4, fixed_abs, tag = 'smem constant byte address 0x4 - core index']
  #allocation1 [shape = 'u32[144,128]{1,0:T(1,128)}', space=vmem, size = 0x12000, scoped, tag = 'internal scratch']
  #allocation2 [shape = 'f32[8,1]{1,0:T(8,128)}', space=vmem, size = 0x1000, scoped, tag = 'scratch operand']
  #allocation3 [shape = 'f32[8,1]{1,0:T(8,128)}', space=vmem, size = 0x1000, scoped, tag = 'scratch operand']
  %s0 = inlined_call_operand.hbm [shape: bf16[16,128], index: 0, kind: input, shape index: {}]
  %s1 = inlined_call_operand.hbm [shape: bf16[16,128], index: 1, kind: input, shape index: {}]
  %s2 = inlined_call_operand.hbm [shape: f32[16,1], index: 2, kind: output, shape index: {}]
  %s3 = sld [smem:[#allocation0]]
  $region57: #{tpu_custom_call.1} parent=0
    _
  %s5 = ssub.s32 1, %s3
  %s6 = scalar_select 0, %s5, %s3
  $region1: #{tpu_custom_call.1} parent=0
    #allocation4 [shape = 'u8[4096]{0}', space=vmem, size = 0x1000, scoped, tag = 'input window, operand 0']
    #allocation5 [shape = 's32[2]{0}', space=sflag, size = 0x8, scoped, tag = 'scoped memory for tpu_custom_call.1']
    #allocation6 [shape = 's32[2]{0}', space=sflag, size = 0x8, scoped, tag = 'scoped memory for tpu_custom_call.1']
    #allocation7 [shape = 'u8[4096]{0}', space=vmem, size = 0x1000, scoped, tag = 'input window, operand 1, single buffered']
    #allocation8 [shape = 's32[1]{0}', space=sflag, size = 0x4, scoped, tag = 'scoped memory for tpu_custom_call.1']
    #allocation9 [shape = 'u8[8192]{0}', space=vmem, size = 0x2000, scoped, tag = 'output window, operand 0']
    %7 = vsyncpa [#allocation5], 0
    %s8 = scalar_lea.sflag [#allocation5], 1
    %9 = vsyncpa %s8, 0
    %10 = vsyncpa [#allocation8], 0
    %11 = vsyncpa [#allocation6], 0
    %s12 = scalar_lea.sflag [#allocation6], 1
    %13 = vsyncpa %s12, 0
    loop: start=0, step=1, limit=4
    $region2: #{tpu_custom_call.1} parent=1 // loop_pre_header
      _
    $region3: #{tpu_custom_call.1} parent=1 // loop_header
      %s15 = sphi 0, %s19
      %p16 = scmp.ge.s32.totalorder %s15, 4
      %s22 = sphi 0, %s34
      %s23 = sphi 0, %s30
      %s24 = sphi 0, %s22
      %s25 = sphi 0, %s23
      %s26 = sphi 0, %s24
      %s27 = sphi 0, %s25
      %s37 = sphi 0, %s39
      %s40 = sphi 0, %s37
      %s41 = sphi 0, %s40
      %s57 = sphi 0, %s41
      %s63 = sphi 0, %s65
      %s66 = sphi 0, %s63
      %s67 = sphi 0, %s66
      %s83 = sphi 0, %s67
      %s89 = sphi 0, %s91
      %s92 = sphi 0, %s89
      %s93 = sphi 0, %s92
      %s109 = sphi 0, %s93
    $region4: #{tpu_custom_call.1} parent=1 // loop_header_branch
      %18 = sbr.rel (%p16) target = $region8
    $region5: #{tpu_custom_call.1} parent=1 // loop_body
      %s20 = ssub.s32 %s15, 1
      %s21 = ssub.s32 %s15, 2
      %s28 = sadd.s32 1, %s23
      %p29 = scmp.ge.s32.totalorder %s28, 1
      %s30 = scalar_select %p29, 0, %s28
      %s31 = sadd.s32 1, %s22
      %s32 = scalar_select %p29, %s31, %s22
      %p33 = scmp.ge.s32.totalorder %s32, 2
      %s34 = scalar_select %p33, 0, %s32
      %s35 = ssub.s32 %s22, %s34
      %p36 = scmp.eq.s32.totalorder %s35, 0
      %s38 = sadd.s32 %s37, 1
      %s39 = scalar_select %p36, %s37, %s38
      %p42 = pneg %p36
      %p43 = scmp.eq.s32.totalorder %s15, 1
      %p44 = por %p42, %p43
      %p45 = scmp.ne.s32.totalorder %s37, %s40
      %p46 = scmp.eq.s32.totalorder %s15, 0
      %p47 = por %p45, %p46
      %p48 = scmp.ne.s32.totalorder %s37, %s40
      %p49 = scmp.eq.s32.totalorder %s20, 1
      %p50 = por %p48, %p49
      %p51 = scmp.ne.s32.totalorder %s40, %s41
      %p52 = scmp.eq.s32.totalorder %s20, 0
      %p53 = por %p51, %p52
      %p54 = scmp.ne.s32.totalorder %s40, %s41
      %p55 = scmp.eq.s32.totalorder %s21, 1
      %p56 = por %p54, %p55
      %p58 = scmp.ne.s32.totalorder %s41, %s57
      %p59 = scmp.eq.s32.totalorder %s21, 0
      %p60 = por %p58, %p59
      %s61 = ssub.s32 %s23, %s30
      %p62 = scmp.eq.s32.totalorder %s61, 0
      %s64 = sadd.s32 %s63, 1
      %s65 = scalar_select %p62, %s63, %s64
      %p68 = pneg %p62
      %p69 = scmp.eq.s32.totalorder %s15, 1
      %p70 = por %p68, %p69
      %p71 = scmp.ne.s32.totalorder %s63, %s66
      %p72 = scmp.eq.s32.totalorder %s15, 0
      %p73 = por %p71, %p72
      %p74 = scmp.ne.s32.totalorder %s63, %s66
      %p75 = scmp.eq.s32.totalorder %s20, 1
      %p76 = por %p74, %p75
      %p77 = scmp.ne.s32.totalorder %s66, %s67
      %p78 = scmp.eq.s32.totalorder %s20, 0
      %p79 = por %p77, %p78
      %p80 = scmp.ne.s32.totalorder %s66, %s67
      %p81 = scmp.eq.s32.totalorder %s21, 1
      %p82 = por %p80, %p81
      %p84 = scmp.ne.s32.totalorder %s67, %s83
      %p85 = scmp.eq.s32.totalorder %s21, 0
      %p86 = por %p84, %p85
      %s87 = ssub.s32 %s22, %s34
      %p88 = scmp.eq.s32.totalorder %s87, 0
      %s90 = sadd.s32 %s89, 1
      %s91 = scalar_select %p88, %s89, %s90
      %p94 = pneg %p88
      %p95 = scmp.eq.s32.totalorder %s15, 1
      %p96 = por %p94, %p95
      %p97 = scmp.ne.s32.totalorder %s89, %s92
      %p98 = scmp.eq.s32.totalorder %s15, 0
      %p99 = por %p97, %p98
      %p100 = scmp.ne.s32.totalorder %s89, %s92
      %p101 = scmp.eq.s32.totalorder %s20, 1
      %p102 = por %p100, %p101
      %p103 = scmp.ne.s32.totalorder %s92, %s93
      %p104 = scmp.eq.s32.totalorder %s20, 0
      %p105 = por %p103, %p104
      %p106 = scmp.ne.s32.totalorder %s92, %s93
      %p107 = scmp.eq.s32.totalorder %s21, 1
      %p108 = por %p106, %p107
      %p110 = scmp.ne.s32.totalorder %s93, %s109
      %p111 = scmp.eq.s32.totalorder %s21, 0
      %p112 = por %p110, %p111
      %p113 = scmp.le.s32.totalorder 1, %s15
      %p114 = scmp.lt.s32.totalorder %s15, 3
      %p115 = pnand %p113, %p114
      %p116 = pneg %p115
      // Predicated region
      $region9: #{tpu_custom_call.1} parent=5 // pred_check
        _
      $region10: #{tpu_custom_call.1} parent=5 // pred_check_branch
        %118 = sbr.rel (%p115) target = $region12
      $region11: #{tpu_custom_call.1} parent=5 // pred_region
        %s119 = ssub.s32 %s15, 1
        // Predicated region
        $region13: #{tpu_custom_call.1} parent=11 // pred_check
          %p120 = pneg %p79
        $region14: #{tpu_custom_call.1} parent=11 // pred_check_branch
          %122 = sbr.rel (%p120) target = $region16
        $region15: #{tpu_custom_call.1} parent=11 // pred_region
          %s123 = smul.u32 2, %s25
          %s125 = ssub.s32 128, 128
          %126 = vsyncadd [#allocation8], %s125
          %s127 = smul.addr %s123, 64
          %s128 = scalar_lea.hbm %s1, %s127
          %s129 = sshll.u32 [#allocation7], 4
          %s130 = int_to_ptr.vmem [resolvable:$true] %s129
          %135 = dma.hbm_to_vmem [thread:$0]  %s128, 128, %s130, [#allocation8], 64, 64, 4
        $region16: #{tpu_custom_call.1} parent=11 // pred_fallthru
          _
      $region12: #{tpu_custom_call.1} parent=5 // pred_fallthru
        _
      %p136 = scmp.lt.s32.totalorder %s15, 2
      // Predicated region
      $region17: #{tpu_custom_call.1} parent=5 // pred_check
        %p137 = pneg %p136
      $region18: #{tpu_custom_call.1} parent=5 // pred_check_branch
        %139 = sbr.rel (%p137) target = $region20
      $region19: #{tpu_custom_call.1} parent=5 // pred_region
        // Predicated region
        $region21: #{tpu_custom_call.1} parent=19 // pred_check
          %p140 = pneg %p47
        $region22: #{tpu_custom_call.1} parent=19 // pred_check_branch
          %142 = sbr.rel (%p140) target = $region24
        $region23: #{tpu_custom_call.1} parent=19 // pred_region
          %s143 = sand.u32 %s37, 1
          %s144 = scalar_lea.sflag [#allocation5], %s143
          %s145 = sand.u32 %s37, 1
          %s146 = smul.addr %s145, 4
          %s147 = scalar_lea.vmem [#allocation4], %s146
          %s149 = ssub.s32 64, 64
          %150 = vsyncadd %s144, %s149
          %s151 = smul.addr %s22, 64
          %s152 = scalar_lea.hbm %s0, %s151
          %s154 = sshll.u32 %s147, 4
          %s155 = int_to_ptr.vmem [resolvable:$true] %s154
          %157 = dma.hbm_to_vmem [thread:$0]  %s152, 64, %s155, %s144
        $region24: #{tpu_custom_call.1} parent=19 // pred_fallthru
          _
      $region20: #{tpu_custom_call.1} parent=5 // pred_fallthru
        _
      %p158 = scmp.le.s32.totalorder 1, %s15
      %p159 = scmp.lt.s32.totalorder %s15, 3
      %p160 = pnand %p158, %p159
      %p161 = pneg %p160
      // Predicated region
      $region25: #{tpu_custom_call.1} parent=5 // pred_check
        _
      $region26: #{tpu_custom_call.1} parent=5 // pred_check_branch
        %163 = sbr.rel (%p160) target = $region28
      $region27: #{tpu_custom_call.1} parent=5 // pred_region
        %s164 = ssub.s32 %s15, 1
        %s165 = sand.u32 %s40, 1
        %s166 = scalar_lea.sflag [#allocation5], %s165
        %s167 = sand.u32 %s40, 1
        %s168 = smul.addr %s167, 4
        %s169 = scalar_lea.vmem [#allocation4], %s168
        // Predicated region
        $region29: #{tpu_custom_call.1} parent=27 // pred_check
          %p170 = pneg %p53
        $region30: #{tpu_custom_call.1} parent=27 // pred_check_branch
          %172 = sbr.rel (%p170) target = $region32
        $region31: #{tpu_custom_call.1} parent=27 // pred_region
          %173 = dma.done %s166, 64
        $region32: #{tpu_custom_call.1} parent=27 // pred_fallthru
          _
        // Predicated region
        $region33: #{tpu_custom_call.1} parent=27 // pred_check
          %p174 = pneg %p79
        $region34: #{tpu_custom_call.1} parent=27 // pred_check_branch
          %176 = sbr.rel (%p174) target = $region36
        $region35: #{tpu_custom_call.1} parent=27 // pred_region
          %177 = dma.done [#allocation8], 128
        $region36: #{tpu_custom_call.1} parent=27 // pred_fallthru
          _
        %s178 = sand.u32 %s40, 1
        %s179 = scalar_lea.sflag [#allocation5], %s178
        %s180 = sand.u32 %s40, 1
        %s181 = smul.addr %s180, 4
        %s182 = scalar_lea.vmem [#allocation4], %s181
        %p183 = pneg %p53
        %p184 = pneg %p50
        %p185 = pneg %p79
        %p186 = pneg %p76
        %p187 = pneg %p105
        %p188 = pneg %p102
        %s189 = sand.u32 %s92, 1
        %s190 = scalar_lea.sflag [#allocation6], %s189
        %s191 = sand.u32 %s92, 1
        %s192 = smul.addr %s191, 8
        %s193 = scalar_lea.vmem [#allocation9], %s192
        %s194 = smul.u32 2, %s25
        %p196 = scmp.eq.s32.totalorder %s25, 0
        // Predicated region
        $region37: #{tpu_custom_call.1} parent=27 // pred_check
          %p197 = pneg %p196
        $region38: #{tpu_custom_call.1} parent=27 // pred_check_branch
          %199 = sbr.rel (%p197) target = $region40
        $region39: #{tpu_custom_call.1} parent=27 // pred_region
          %vm200 = vcmask 7168
          %201 = vst.msk [vmem:[#allocation2] sm:$0xff] %vm200, -inf
          %202 = vst.msk [vmem:[#allocation3] sm:$0xff] %vm200, 0.0
        $region40: #{tpu_custom_call.1} parent=27 // pred_fallthru
          _
        %v203 = vld [vmem:[%s169] sm:$0xf]
        %v204 = vld [vmem:[#allocation7] sm:$0xf]
        %v205 = vld [vmem:[#allocation7 + $0x4] sm:$0xf]
        %v208 = vunpack.c.l.b16 %v204
        %v209 = vunpack.c.l.b16 %v205
        %v210 = vpack.c.b16 %v209, %v208
        %212 = vmatprep.subr.bf16.mxu0 0
        %213 = vmatpush1.bf16.xpose.msra.mxu0 %v210
        %214 = vmatprep.subr.bf16.mxu0 0
        %215 = vmatpush1.bf16.xpose.msra.mxu0 0
        %216 = vmatprep.subr.bf16.mxu0 0
        %217 = vmatpush1.bf16.xpose.msra.mxu0 0
        %218 = vmatprep.subr.bf16.mxu0 0
        %219 = vmatpush1.bf16.xpose.msra.mxu0 0
        %220 = vmatprep.subr.bf16.mxu0 0
        %221 = vmatpush1.bf16.xpose.msra.mxu0 0
        %222 = vmatprep.subr.bf16.mxu0 0
        %223 = vmatpush1.bf16.xpose.msra.mxu0 0
        %224 = vmatprep.subr.bf16.mxu0 0
        %225 = vmatpush1.bf16.xpose.msra.mxu0 0
        %226 = vmatprep.subr.bf16.mxu0 0
        %227 = vmatpush1.bf16.xpose.msra.mxu0 0
        %228 = vmatprep.subr.bf16.mxu0 0
        %229 = vmatpush1.bf16.xpose.msra.mxu0 0
        %230 = vmatprep.subr.bf16.mxu0 0
        %231 = vmatpush1.bf16.xpose.msra.mxu0 0
        %232 = vmatprep.subr.bf16.mxu0 0
        %233 = vmatpush1.bf16.xpose.msra.mxu0 0
        %234 = vmatprep.subr.bf16.mxu0 0
        %235 = vmatpush1.bf16.xpose.msra.mxu0 0
        %236 = vmatprep.subr.bf16.mxu0 0
        %237 = vmatpush1.bf16.xpose.msra.mxu0 0
        %238 = vmatprep.subr.bf16.mxu0 0
        %239 = vmatpush1.bf16.xpose.msra.mxu0 0
        %240 = vmatprep.subr.bf16.mxu0 0
        %241 = vmatpush1.bf16.xpose.msra.mxu0 0
        %242 = vmatprep.subr.bf16.mxu0 0
        %243 = vmatpush1.bf16.xpose.msra.mxu0 0
        %244 = vmatprep.mubr.bf16.mxu0 0
        %245 = vmatmul.mubr.bf16.gmra.mrb[0].mxu0 %v203
        %v246 = vpop.f32.mrb[0].mxu0
        %v247 = vadd.f32 0.0, %v246
        %v248 = vpop.f32.mrb[0].mxu0
        %v249 = vpop.f32.mrb[0].mxu0
        %v250 = vpop.f32.mrb[0].mxu0
        %251 = vdwg.mxu0
        %v252 = vmul.f32 %v247, 2.0
        %v253 = vld [vmem:[#allocation2] sm:$0xff]
        %vm254 = vcmask 130048
        %v255 = vsel %vm254, %v252, -inf
        %256 = vmax.xlane.f32.xlu0 %v255
        %v257 = vpop.xlane.xlu0 %256
        %v258 = vmax.f32 %v253, %v257
        %v259 = vsub.f32 %v253, %v258
        %v260 = vmul.f32 %v259, 1.442695
        %v261 = vpow.pop %v260
        %v262 = vld [vmem:[#allocation3] sm:$0xff]
        %v263 = vmul.f32 %v261, %v262
        %265 = vset.pattern.permute.xlu0 0
        %266 = vperm.xlu0 %265, %v258
        %v267 = vpop.permute.xlu0 %266
        %v269 = vsub.f32 %v252, %v267
        %v270 = vmul.f32 %v269, 1.442695
        %v271 = vpow.pop %v270
        %v272 = vsel %vm254, %v271, 0.0
        %273 = vadd.xlane.f32.xlu0 %v272
        %v274 = vpop.xlane.xlu0 %273
        %v275 = vadd.f32 %v263, %v274
        %vm276 = vcmask 7168
        %277 = vst.msk [vmem:[#allocation3] sm:$0xff] %vm276, %v275
        %278 = vst.msk [vmem:[#allocation2] sm:$0xff] %vm276, %v258
        // Predicated region
        $region41: #{tpu_custom_call.1} parent=27 // pred_check
          %p279 = pneg %p196
        $region42: #{tpu_custom_call.1} parent=27 // pred_check_branch
          %281 = sbr.rel (%p279) target = $region44
        $region43: #{tpu_custom_call.1} parent=27 // pred_region
          %v282 = vld [vmem:[#allocation2] sm:$0xff]
          %v283 = vld [vmem:[#allocation3] sm:$0xff]
          %v284 = vsub.f32 0.0, %v282
          %v285 = vmul.f32 %v284, 1.442695
          %v286 = vpow.pop %v285
          %v287 = vmul.f32 %v286, -5.389056
          %v288 = vadd.f32 %v283, %v287
          %v289 = vmax.f32 %v288, 1e-30
          %v290 = vlog2.pop %v289
          %v291 = vmul.f32 %v290, 0.6931472
          %v292 = vadd.f32 %v282, %v291
          %293 = vst.msk [vmem:[%s193] sm:$0xff] %vm276, %v292
        $region44: #{tpu_custom_call.1} parent=27 // pred_fallthru
          _
        %s294 = sand.u32 %s92, 1
        %s295 = scalar_lea.sflag [#allocation6], %s294
        %s296 = sand.u32 %s92, 1
        %s297 = smul.addr %s296, 8
        %s298 = scalar_lea.vmem [#allocation9], %s297
        // Predicated region
        $region45: #{tpu_custom_call.1} parent=27 // pred_check
          %p299 = pneg %p102
        $region46: #{tpu_custom_call.1} parent=27 // pred_check_branch
          %301 = sbr.rel (%p299) target = $region48
        $region47: #{tpu_custom_call.1} parent=27 // pred_region
          %s303 = ssub.s32 128, 128
          %304 = vsyncadd %s295, %s303
          %s305 = smul.addr %s24, 128
          %s306 = scalar_lea.hbm %s2, %s305
          %s308 = sshll.u32 %s298, 4
          %s309 = int_to_ptr.vmem [resolvable:$true] %s308
          %311 = dma.vmem_to_hbm [thread:$0]  %s309, 128, %s306, %s295
        $region48: #{tpu_custom_call.1} parent=27 // pred_fallthru
          _
      $region28: #{tpu_custom_call.1} parent=5 // pred_fallthru
        _
      %p312 = scmp.le.s32.totalorder 2, %s15
      // Predicated region
      $region49: #{tpu_custom_call.1} parent=5 // pred_check
        %p313 = pneg %p312
      $region50: #{tpu_custom_call.1} parent=5 // pred_check_branch
        %315 = sbr.rel (%p313) target = $region52
      $region51: #{tpu_custom_call.1} parent=5 // pred_region
        %s316 = ssub.s32 %s15, 2
        // Predicated region
        $region53: #{tpu_custom_call.1} parent=51 // pred_check
          %p317 = pneg %p108
        $region54: #{tpu_custom_call.1} parent=51 // pred_check_branch
          %319 = sbr.rel (%p317) target = $region56
        $region55: #{tpu_custom_call.1} parent=51 // pred_region
          %s320 = sand.u32 %s93, 1
          %s321 = scalar_lea.sflag [#allocation6], %s320
          %s322 = sand.u32 %s93, 1
          %s323 = smul.addr %s322, 8
          %s324 = scalar_lea.vmem [#allocation9], %s323
          %325 = dma.done %s321, 128
        $region56: #{tpu_custom_call.1} parent=51 // pred_fallthru
          _
      $region52: #{tpu_custom_call.1} parent=5 // pred_fallthru
        _
    $region6: #{tpu_custom_call.1} parent=1 // loop_footer
      %s19 = sadd.s32 1, %s15
    $region7: #{tpu_custom_call.1} parent=1 // loop_footer_branch
      %14 = sbr.rel target = $region3
    $region8: #{tpu_custom_call.1} parent=1 // loop_exit
      _
    %326 = vsyncpa [#allocation5], 1
    %s327 = scalar_lea.sflag [#allocation5], 1
    %328 = vsyncpa %s327, 1
    %329 = vsyncpa [#allocation8], 1
    %330 = vsyncpa [#allocation6], 1
    %s331 = scalar_lea.sflag [#allocation6], 1
    %332 = vsyncpa %s331, 1

</llo_original>
